<compile_context>
chip_gen: v5e
topology: v5e:2x2
jax: 0.10.0
libtpu: 0.0.40
codegen_flags: <defaults>
</compile_context>

<pallas_src>
import functools

import jax
import jax.numpy as jnp
from jax.experimental import pallas as pl
from jax.experimental.pallas import tpu as pltpu


# ------------------------- helpers -------------------------

def _cdiv(a: int, b: int) -> int:
    return -(-a // b)


def _round_up(x: int, m: int) -> int:
    return ((x + m - 1) // m) * m


def _pad2(x, rows, cols, dtype):
    x = x.astype(dtype)
    return jnp.pad(x, ((0, rows - x.shape[0]), (0, cols - x.shape[1])))


# ------------------------- Pallas kernel -------------------------

def _mahjong_net_kernel(x_ref, w1_ref, wo_ref, bias_ref, out_ref, *, hp, ap):
    """One batch tile.

    x_ref   : (tile_b, K_cat_p)  bf16   fused [self | flat(record) | global] rows
    w1_ref  : (K_cat_p, 3*hp)    bf16   block-diagonal [Ws ; Wr_fold ; Wg]
    wo_ref  : (hp, ap)           bf16
    bias_ref: (8, max(hp, ap))   f32    rows 0..3 = bs, br, bg, bo (zero padded)
    out_ref : (tile_b, ap)       bf16
    """
    # Single MXU matmul produces all three branch pre-activations as 128-aligned
    # column groups; bf16 operands, f32 accumulation.
    pre = jnp.dot(x_ref[...], w1_ref[...], preferred_element_type=jnp.float32)

    b_all = bias_ref[...]                                   # (8, maxw) f32
    h1 = jnp.maximum(pre[:, 0 * hp:1 * hp] + b_all[0:1, :hp], 0.0)
    h2 = jnp.maximum(pre[:, 1 * hp:2 * hp] + b_all[1:2, :hp], 0.0)
    h3 = jnp.maximum(pre[:, 2 * hp:3 * hp] + b_all[2:3, :hp], 0.0)
    h = jnp.maximum(h1 + h2 + h3, 0.0)

    logits = jnp.dot(h.astype(wo_ref.dtype), wo_ref[...],
                     preferred_element_type=jnp.float32) + b_all[3:4, :ap]
    out_ref[...] = logits.astype(out_ref.dtype)


# ------------------------- wrapper -------------------------

def _derive_vmem_limit(tile_b, kcat_p, hp, ap, maxw):
    """Tight VMEM budget from actual buffer sizes (bf16 operands, f32 scratch)."""
    h3p = 3 * hp
    bufs = (2 * tile_b * kcat_p * 2      # fused input, double-buffered, bf16
            + 2 * tile_b * ap * 2        # output, double-buffered, bf16
            + 2 * kcat_p * h3p * 2       # W1 (resident; default double-buffer), bf16
            + 2 * hp * ap * 2            # Wo, bf16
            + 2 * 8 * maxw * 4)          # merged bias block, f32
    interm = tile_b * (h3p + hp + ap) * 4          # f32 working set inside the body
    derived = int((bufs + interm) * 1.25) + (2 << 20)
    return max(16 << 20, min(derived, 64 << 20))


@functools.partial(jax.jit, static_argnames=("tile_b",))
def supervised_mahjong_forward(self_info, record, global_info, params, *, tile_b=None):
    """Pallas implementation of SupervisedMahjong.forward (== network forward)."""
    B, d_self = self_info.shape
    _, T, d_rec = record.shape
    d_glob = global_info.shape[1]
    hidden = params["ws"].shape[1]
    num_actions = params["wo"].shape[1]

    # Fold mean over T into the record weight (exact by linearity) and flatten record.
    wr_fold = jnp.tile(params["wr"], (T, 1)) / jnp.float32(T)      # (T*d_rec, hidden)

    # ---- padded sizes (128-lane multiples; do NOT inflate to 256 -- mem-bound) ----
    kcat = d_self + T * d_rec + d_glob
    kcat_p = _round_up(kcat, 128)
    hp = _round_up(hidden, 128)
    ap = _round_up(num_actions, 128)
    maxw = max(hp, ap)

    # ---- batch tile: ~1024 rows/step, >=2 steps when possible, minimal padding ----
    if tile_b is None:
        n_steps = max(1, _cdiv(B, 1024))
        if B >= 16 and n_steps < 2:
            n_steps = 2                      # keep both v7x TensorCores busy
        tile_b = _round_up(_cdiv(B, n_steps), 8)
    bp = _round_up(B, tile_b)
    grid = (bp // tile_b,)

    cdt = jnp.bfloat16  # MXU-native operand dtype; accumulation stays f32.

    # ---- fused, lane-dense input: [self | flat(record) | global] padded once ----
    x_cat = jnp.concatenate(
        [self_info, record.reshape(B, T * d_rec), global_info], axis=1)   # (B, kcat)
    x_cat = _pad2(x_cat, bp, kcat_p, cdt)

    # ---- block-diagonal first-layer weight: one matmul for all three branches ----
    w1 = jnp.zeros((kcat_p, 3 * hp), jnp.float32)
    w1 = w1.at[0:d_self, 0:hidden].set(params["ws"])
    w1 = w1.at[d_self:d_self + T * d_rec, hp:hp + hidden].set(wr_fold)
    w1 = w1.at[d_self + T * d_rec:kcat, 2 * hp:2 * hp + hidden].set(params["wg"])
    w1 = w1.astype(cdt)

    wo = _pad2(params["wo"], hp, ap, cdt)

    # ---- merged bias block: rows 0..3 = bs, br, bg, bo (8 sublanes, f32) ----
    bias = jnp.zeros((8, maxw), jnp.float32)
    bias = bias.at[0, :hidden].set(params["bs"].reshape(-1))
    bias = bias.at[1, :hidden].set(params["br"].reshape(-1))
    bias = bias.at[2, :hidden].set(params["bg"].reshape(-1))
    bias = bias.at[3, :num_actions].set(params["bo"].reshape(-1))

    kernel = functools.partial(_mahjong_net_kernel, hp=hp, ap=ap)

    out_padded = pl.pallas_call(
        kernel,
        out_shape=jax.ShapeDtypeStruct((bp, ap), jnp.bfloat16),   # bf16 store
        grid=grid,
        in_specs=[
            pl.BlockSpec((tile_b, kcat_p), lambda i: (i, 0)),     # fused input tile
            pl.BlockSpec((kcat_p, 3 * hp), lambda i: (0, 0)),     # W1 (resident)
            pl.BlockSpec((hp, ap), lambda i: (0, 0)),             # Wo (resident)
            pl.BlockSpec((8, maxw), lambda i: (0, 0)),            # merged biases
        ],
        out_specs=pl.BlockSpec((tile_b, ap), lambda i: (i, 0)),
        compiler_params=pltpu.CompilerParams(
            dimension_semantics=("parallel",),
            vmem_limit_bytes=_derive_vmem_limit(tile_b, kcat_p, hp, ap, maxw),
        ),
    )(x_cat, w1, wo, bias)

    # bf16 logits; caller casts to f32 only if the loss needs it.
    return out_padded[:B, :num_actions]


# ------------------------- reference (mirrors kernel numerics) -------------------------

def _reference_forward(self_info, record, global_info, params):
    T = record.shape[1]
    cdt = jnp.bfloat16
    si = self_info.astype(cdt)
    gi = global_info.astype(cdt)
    rec_flat = record.reshape(record.shape[0], -1).astype(cdt)
    wr_fold = (jnp.tile(params["wr"], (T, 1)) / jnp.float32(T)).astype(cdt)

    h1 = jnp.maximum(jnp.dot(si, params["ws"].astype(cdt),
                             preferred_element_type=jnp.float32) + params["bs"], 0.0)
    h2 = jnp.maximum(jnp.dot(rec_flat, wr_fold,
                             preferred_element_type=jnp.float32) + params["br"], 0.0)
    h3 = jnp.maximum(jnp.dot(gi, params["wg"].astype(cdt),
                             preferred_element_type=jnp.float32) + params["bg"], 0.0)
    h = jnp.maximum(h1 + h2 + h3, 0.0).astype(cdt)
    out = jnp.dot(h, params["wo"].astype(cdt),
                  preferred_element_type=jnp.float32) + params["bo"]
    return out.astype(jnp.bfloat16)


# ------------------------- parameter init -------------------------

def init_params(key, d_self, d_rec, d_glob, hidden, num_actions):
    ks = jax.random.split(key, 8)

    def lin(k, fan_in, fan_out):
        scale = 1.0 / jnp.sqrt(jnp.float32(fan_in))
        return jax.random.uniform(k, (fan_in, fan_out), jnp.float32, -scale, scale)

    return {
        "ws": lin(ks[0], d_self, hidden),
        "bs": jax.random.uniform(ks[1], (1, hidden), jnp.float32, -0.05, 0.05),
        "wr": lin(ks[2], d_rec, hidden),
        "br": jax.random.uniform(ks[3], (1, hidden), jnp.float32, -0.05, 0.05),
        "wg": lin(ks[4], d_glob, hidden),
        "bg": jax.random.uniform(ks[5], (1, hidden), jnp.float32, -0.05, 0.05),
        "wo": lin(ks[6], hidden, num_actions),
        "bo": jax.random.uniform(ks[7], (1, num_actions), jnp.float32, -0.05, 0.05),
    }


# ------------------------- demo / smoke test -------------------------

if __name__ == "__main__":
    B, D_SELF, T, D_REC, D_GLOB, HIDDEN, NUM_ACTIONS = 8, 32, 8, 16, 8, 64, 48

    key = jax.random.PRNGKey(0)
    k_si, k_rec, k_gi, k_p = jax.random.split(key, 4)

    self_info = jax.random.normal(k_si, (B, D_SELF), jnp.float32)
    record = jax.random.normal(k_rec, (B, T, D_REC), jnp.float32)
    global_info = jax.random.normal(k_gi, (B, D_GLOB), jnp.float32)
    params = init_params(k_p, D_SELF, D_REC, D_GLOB, HIDDEN, NUM_ACTIONS)

    out = supervised_mahjong_forward(self_info, record, global_info, params)
    out = jax.block_until_ready(out)

    ref = _reference_forward(self_info, record, global_info, params)
    assert out.shape == (B, NUM_ACTIONS)
    diff = jnp.max(jnp.abs(out.astype(jnp.float32) - ref.astype(jnp.float32)))
    assert jnp.allclose(out.astype(jnp.float32), ref.astype(jnp.float32),
                        atol=2e-2, rtol=2e-2), float(diff)

    print("KERNEL_OK")
</pallas_src>

<mosaic_0001>
module attributes {stable_mosaic.version = 11 : i64} {
  func.func @_mahjong_net_kernel(%arg0: i32, %arg1: memref<8x256xbf16, #tpu.memory_space<vmem>>, %arg2: memref<256x384xbf16, #tpu.memory_space<vmem>>, %arg3: memref<128x128xbf16, #tpu.memory_space<vmem>>, %arg4: memref<8x128xf32, #tpu.memory_space<vmem>>, %arg5: memref<8x128xbf16, #tpu.memory_space<vmem>>) attributes {dimension_semantics = [#tpu.dimension_semantics<parallel>], iteration_bounds = array<i64: 1>, scalar_prefetch = 0 : i64, scratch_operands = 0 : i64, tpu.core_type = #tpu.core_type<tc>, window_params = [{transform_indices = @transform_0, window_bounds = array<i64: 8, 256>}, {pipeline_mode = #tpu.pipeline_mode<synchronous>, transform_indices = @transform_1, window_bounds = array<i64: 256, 384>}, {pipeline_mode = #tpu.pipeline_mode<synchronous>, transform_indices = @transform_2, window_bounds = array<i64: 128, 128>}, {pipeline_mode = #tpu.pipeline_mode<synchronous>, transform_indices = @transform_3, window_bounds = array<i64: 8, 128>}, {transform_indices = @transform_4, window_bounds = array<i64: 8, 128>}]} {
    %c0 = arith.constant 0 : index
    %c0_0 = arith.constant 0 : index
    %0 = vector.load %arg1[%c0, %c0_0] : memref<8x256xbf16, #tpu.memory_space<vmem>>, vector<8x256xbf16>
    %c0_1 = arith.constant 0 : index
    %c0_2 = arith.constant 0 : index
    %1 = vector.load %arg2[%c0_1, %c0_2] : memref<256x384xbf16, #tpu.memory_space<vmem>>, vector<256x384xbf16>
    %cst = arith.constant dense<0.000000e+00> : vector<8x384xf32>
    %2 = tpu.matmul %0, %1, %cst {dimension_numbers = #tpu.dot_dimension_numbers<[1], [0], [0], [1], [0, 0, 1, 1], [], []>} : vector<8x256xbf16>, vector<256x384xbf16>, vector<8x384xf32> -> vector<8x384xf32>
    %c0_3 = arith.constant 0 : index
    %c0_4 = arith.constant 0 : index
    %3 = vector.load %arg4[%c0_3, %c0_4] : memref<8x128xf32, #tpu.memory_space<vmem>>, vector<8x128xf32>
    %4 = vector.extract_strided_slice %2 {offsets = [0, 0], sizes = [8, 128], strides = [1, 1]} : vector<8x384xf32> to vector<8x128xf32>
    %5 = vector.extract_strided_slice %3 {offsets = [0, 0], sizes = [1, 128], strides = [1, 1]} : vector<8x128xf32> to vector<1x128xf32>
    %6 = vector.broadcast %5 : vector<1x128xf32> to vector<8x128xf32>
    %7 = arith.addf %4, %6 : vector<8x128xf32>
    %cst_5 = arith.constant 0.000000e+00 : f32
    %8 = vector.broadcast %cst_5 : f32 to vector<8x128xf32>
    %9 = arith.maximumf %7, %8 : vector<8x128xf32>
    %10 = vector.extract_strided_slice %2 {offsets = [0, 128], sizes = [8, 128], strides = [1, 1]} : vector<8x384xf32> to vector<8x128xf32>
    %11 = vector.extract_strided_slice %3 {offsets = [1, 0], sizes = [1, 128], strides = [1, 1]} : vector<8x128xf32> to vector<1x128xf32>
    %12 = vector.broadcast %11 : vector<1x128xf32> to vector<8x128xf32>
    %13 = arith.addf %10, %12 : vector<8x128xf32>
    %cst_6 = arith.constant 0.000000e+00 : f32
    %14 = vector.broadcast %cst_6 : f32 to vector<8x128xf32>
    %15 = arith.maximumf %13, %14 : vector<8x128xf32>
    %16 = vector.extract_strided_slice %2 {offsets = [0, 256], sizes = [8, 128], strides = [1, 1]} : vector<8x384xf32> to vector<8x128xf32>
    %17 = vector.extract_strided_slice %3 {offsets = [2, 0], sizes = [1, 128], strides = [1, 1]} : vector<8x128xf32> to vector<1x128xf32>
    %18 = vector.broadcast %17 : vector<1x128xf32> to vector<8x128xf32>
    %19 = arith.addf %16, %18 : vector<8x128xf32>
    %cst_7 = arith.constant 0.000000e+00 : f32
    %20 = vector.broadcast %cst_7 : f32 to vector<8x128xf32>
    %21 = arith.maximumf %19, %20 : vector<8x128xf32>
    %22 = arith.addf %9, %15 : vector<8x128xf32>
    %23 = arith.addf %22, %21 : vector<8x128xf32>
    %cst_8 = arith.constant 0.000000e+00 : f32
    %24 = vector.broadcast %cst_8 : f32 to vector<8x128xf32>
    %25 = arith.maximumf %23, %24 : vector<8x128xf32>
    %26 = arith.truncf %25 : vector<8x128xf32> to vector<8x128xbf16>
    %c0_9 = arith.constant 0 : index
    %c0_10 = arith.constant 0 : index
    %27 = vector.load %arg3[%c0_9, %c0_10] : memref<128x128xbf16, #tpu.memory_space<vmem>>, vector<128x128xbf16>
    %cst_11 = arith.constant dense<0.000000e+00> : vector<8x128xf32>
    %28 = tpu.matmul %26, %27, %cst_11 {dimension_numbers = #tpu.dot_dimension_numbers<[1], [0], [0], [1], [0, 0, 1, 1], [], []>} : vector<8x128xbf16>, vector<128x128xbf16>, vector<8x128xf32> -> vector<8x128xf32>
    %29 = vector.extract_strided_slice %3 {offsets = [3, 0], sizes = [1, 128], strides = [1, 1]} : vector<8x128xf32> to vector<1x128xf32>
    %30 = vector.broadcast %29 : vector<1x128xf32> to vector<8x128xf32>
    %31 = arith.addf %28, %30 : vector<8x128xf32>
    %32 = arith.truncf %31 : vector<8x128xf32> to vector<8x128xbf16>
    %c0_12 = arith.constant 0 : index
    %c0_13 = arith.constant 0 : index
    %33 = vector.load %arg5[%c0_12, %c0_13] : memref<8x128xbf16, #tpu.memory_space<vmem>>, vector<8x128xbf16>
    tpu.vector_store %arg5[%c0_12, %c0_13], %32 {strides = array<i32>} : memref<8x128xbf16, #tpu.memory_space<vmem>>, vector<8x128xbf16>,
    return
  }
  func.func @transform_0(%arg0: i32) -> (i32, i32) {
    %c0_i32 = arith.constant 0 : i32
    %c0_i32_0 = arith.constant 0 : i32
    return %arg0, %c0_i32 : i32, i32
  }
  func.func @transform_1(%arg0: i32) -> (i32, i32) {
    %c0_i32 = arith.constant 0 : i32
    %c0_i32_0 = arith.constant 0 : i32
    %c0_i32_1 = arith.constant 0 : i32
    return %c0_i32, %c0_i32_0 : i32, i32
  }
  func.func @transform_2(%arg0: i32) -> (i32, i32) {
    %c0_i32 = arith.constant 0 : i32
    %c0_i32_0 = arith.constant 0 : i32
    %c0_i32_1 = arith.constant 0 : i32
    return %c0_i32, %c0_i32_0 : i32, i32
  }
  func.func @transform_3(%arg0: i32) -> (i32, i32) {
    %c0_i32 = arith.constant 0 : i32
    %c0_i32_0 = arith.constant 0 : i32
    %c0_i32_1 = arith.constant 0 : i32
    return %c0_i32, %c0_i32_0 : i32, i32
  }
  func.func @transform_4(%arg0: i32) -> (i32, i32) {
    %c0_i32 = arith.constant 0 : i32
    %c0_i32_0 = arith.constant 0 : i32
    return %arg0, %c0_i32 : i32, i32
  }
}

</mosaic_0001>

<llo_original>
// kernel: supervised_mahjong_forward.1
$region0: #{supervised_mahjong_forward.1}
  #allocation0 [shape = 'u32[]', space=smem, size = 0x4, offset = 0x4, fixed_abs, tag = 'smem constant byte address 0x4 - core index']
  #allocation1 [shape = 'u32[72,128]{1,0:T(1,128)}', space=vmem, size = 0x9000, scoped, tag = 'internal scratch']
  %s0 = inlined_call_operand.vmem [shape: bf16[8,256], index: 0, kind: input, shape index: {}]
  %s1 = inlined_call_operand.vmem [shape: bf16[256,384], index: 1, kind: input, shape index: {}]
  %s2 = inlined_call_operand.vmem [shape: bf16[128,128], index: 2, kind: input, shape index: {}]
  %s3 = inlined_call_operand.vmem [shape: f32[8,128], index: 3, kind: input, shape index: {}]
  %s4 = inlined_call_operand.hbm [shape: bf16[8,128], index: 4, kind: output, shape index: {}]
  %s5 = sld [smem:[#allocation0]]
  $region26: #{supervised_mahjong_forward.1} parent=0
    _
  %s7 = ssub.s32 1, %s5
  %s8 = scalar_select 0, %s7, %s5
  $region1: #{supervised_mahjong_forward.1} parent=0
    #allocation2 [shape = 'u8[2048]{0}', space=vmem, size = 0x800, scoped, tag = 'output window, operand 0, single buffered']
    #allocation3 [shape = 's32[1]{0}', space=sflag, size = 0x4, scoped, tag = 'scoped memory for supervised_mahjong_forward.1']
    %9 = vsyncpa [#allocation3], 0
    // Predicated region
    $region2: #{supervised_mahjong_forward.1} parent=1 // pred_check
      _
    $region3: #{supervised_mahjong_forward.1} parent=1 // pred_check_branch
      %11 = sbr.rel (0) target = $region5
    $region4: #{supervised_mahjong_forward.1} parent=1 // pred_region
      _
    $region5: #{supervised_mahjong_forward.1} parent=1 // pred_fallthru
      _
    // Predicated region
    $region6: #{supervised_mahjong_forward.1} parent=1 // pred_check
      _
    $region7: #{supervised_mahjong_forward.1} parent=1 // pred_check_branch
      %13 = sbr.rel (0) target = $region9
    $region8: #{supervised_mahjong_forward.1} parent=1 // pred_region
      _
    $region9: #{supervised_mahjong_forward.1} parent=1 // pred_fallthru
      _
    // Predicated region
    $region10: #{supervised_mahjong_forward.1} parent=1 // pred_check
      _
    $region11: #{supervised_mahjong_forward.1} parent=1 // pred_check_branch
      %15 = sbr.rel (0) target = $region13
    $region12: #{supervised_mahjong_forward.1} parent=1 // pred_region
      _
    $region13: #{supervised_mahjong_forward.1} parent=1 // pred_fallthru
      _
    // Predicated region
    $region14: #{supervised_mahjong_forward.1} parent=1 // pred_check
      _
    $region15: #{supervised_mahjong_forward.1} parent=1 // pred_check_branch
      %17 = sbr.rel (0) target = $region17
    $region16: #{supervised_mahjong_forward.1} parent=1 // pred_region
      _
    $region17: #{supervised_mahjong_forward.1} parent=1 // pred_fallthru
      _
    %v18 = vld [vmem:[%s0] sm:$0xff]
    %v19 = vld [vmem:[%s1] sm:$0xff]
    %v20 = vld [vmem:[%s1 + $0x8] sm:$0xf]
    %v21 = vld [vmem:[%s1 + $0xc] sm:$0xff]
    %v22 = vld [vmem:[%s1 + $0x14] sm:$0xf]
    %v23 = vld [vmem:[%s1 + $0x18] sm:$0xff]
    %v24 = vld [vmem:[%s1 + $0x20] sm:$0xf]
    %v25 = vld [vmem:[%s1 + $0x24] sm:$0xff]
    %v26 = vld [vmem:[%s1 + $0x2c] sm:$0xf]
    %v27 = vld [vmem:[%s1 + $0x30] sm:$0xff]
    %v28 = vld [vmem:[%s1 + $0x38] sm:$0xf]
    %v29 = vld [vmem:[%s1 + $0x3c] sm:$0xff]
    %v30 = vld [vmem:[%s1 + $0x44] sm:$0xf]
    %v31 = vld [vmem:[%s1 + $0x48] sm:$0xff]
    %v32 = vld [vmem:[%s1 + $0x50] sm:$0xf]
    %v33 = vld [vmem:[%s1 + $0x54] sm:$0xff]
    %v34 = vld [vmem:[%s1 + $0x5c] sm:$0xf]
    %v35 = vld [vmem:[%s1 + $0x60] sm:$0xff]
    %v36 = vld [vmem:[%s1 + $0x68] sm:$0xf]
    %v37 = vld [vmem:[%s1 + $0x6c] sm:$0xff]
    %v38 = vld [vmem:[%s1 + $0x74] sm:$0xf]
    %v39 = vld [vmem:[%s1 + $0x78] sm:$0xff]
    %v40 = vld [vmem:[%s1 + $0x80] sm:$0xf]
    %v41 = vld [vmem:[%s1 + $0x84] sm:$0xff]
    %v42 = vld [vmem:[%s1 + $0x8c] sm:$0xf]
    %v43 = vld [vmem:[%s1 + $0x90] sm:$0xff]
    %v44 = vld [vmem:[%s1 + $0x98] sm:$0xf]
    %v45 = vld [vmem:[%s1 + $0x9c] sm:$0xff]
    %v46 = vld [vmem:[%s1 + $0xa4] sm:$0xf]
    %v47 = vld [vmem:[%s1 + $0xa8] sm:$0xff]
    %v48 = vld [vmem:[%s1 + $0xb0] sm:$0xf]
    %v49 = vld [vmem:[%s1 + $0xb4] sm:$0xff]
    %v50 = vld [vmem:[%s1 + $0xbc] sm:$0xf]
    %v51 = vld [vmem:[%s1 + $0xc0] sm:$0xff]
    %v52 = vld [vmem:[%s1 + $0xc8] sm:$0xf]
    %v53 = vld [vmem:[%s1 + $0xcc] sm:$0xff]
    %v54 = vld [vmem:[%s1 + $0xd4] sm:$0xf]
    %v55 = vld [vmem:[%s1 + $0xd8] sm:$0xff]
    %v56 = vld [vmem:[%s1 + $0xe0] sm:$0xf]
    %v57 = vld [vmem:[%s1 + $0xe4] sm:$0xff]
    %v58 = vld [vmem:[%s1 + $0xec] sm:$0xf]
    %v59 = vld [vmem:[%s1 + $0xf0] sm:$0xff]
    %v60 = vld [vmem:[%s1 + $0xf8] sm:$0xf]
    %v61 = vld [vmem:[%s1 + $0xfc] sm:$0xff]
    %v62 = vld [vmem:[%s1 + $0x104] sm:$0xf]
    %v63 = vld [vmem:[%s1 + $0x108] sm:$0xff]
    %v64 = vld [vmem:[%s1 + $0x110] sm:$0xf]
    %v65 = vld [vmem:[%s1 + $0x114] sm:$0xff]
    %v66 = vld [vmem:[%s1 + $0x11c] sm:$0xf]
    %v67 = vld [vmem:[%s1 + $0x120] sm:$0xff]
    %v68 = vld [vmem:[%s1 + $0x128] sm:$0xf]
    %v69 = vld [vmem:[%s1 + $0x12c] sm:$0xff]
    %v70 = vld [vmem:[%s1 + $0x134] sm:$0xf]
    %v71 = vld [vmem:[%s1 + $0x138] sm:$0xff]
    %v72 = vld [vmem:[%s1 + $0x140] sm:$0xf]
    %v73 = vld [vmem:[%s1 + $0x144] sm:$0xff]
    %v74 = vld [vmem:[%s1 + $0x14c] sm:$0xf]
    %v75 = vld [vmem:[%s1 + $0x150] sm:$0xff]
    %v76 = vld [vmem:[%s1 + $0x158] sm:$0xf]
    %v77 = vld [vmem:[%s1 + $0x15c] sm:$0xff]
    %v78 = vld [vmem:[%s1 + $0x164] sm:$0xf]
    %v79 = vld [vmem:[%s1 + $0x168] sm:$0xff]
    %v80 = vld [vmem:[%s1 + $0x170] sm:$0xf]
    %v81 = vld [vmem:[%s1 + $0x174] sm:$0xff]
    %v82 = vld [vmem:[%s1 + $0x17c] sm:$0xf]
    %v84 = vunpack.c.l.b16 %v18
    %v85 = vunpack.c.h.b16 %v18
    %v86 = vpack.c.b16 %v84, %v84
    %v87 = vpack.c.b16 %v85, %v85
    %v154 = vunpack.c.l.b16 %v19
    %v155 = vunpack.c.h.b16 %v19
    %v156 = vunpack.c.l.b16 %v20
    %v157 = vunpack.c.l.b16 %v21
    %v158 = vunpack.c.h.b16 %v21
    %v159 = vunpack.c.l.b16 %v22
    %v160 = vunpack.c.l.b16 %v23
    %v161 = vunpack.c.h.b16 %v23
    %v162 = vunpack.c.l.b16 %v24
    %v163 = vunpack.c.l.b16 %v25
    %v164 = vunpack.c.h.b16 %v25
    %v165 = vunpack.c.l.b16 %v26
    %v166 = vunpack.c.l.b16 %v27
    %v167 = vunpack.c.h.b16 %v27
    %v168 = vunpack.c.l.b16 %v28
    %v169 = vunpack.c.l.b16 %v29
    %v170 = vunpack.c.h.b16 %v29
    %v171 = vunpack.c.l.b16 %v30
    %v172 = vunpack.c.l.b16 %v31
    %v173 = vunpack.c.h.b16 %v31
    %v174 = vunpack.c.l.b16 %v32
    %v175 = vunpack.c.l.b16 %v33
    %v176 = vunpack.c.h.b16 %v33
    %v177 = vunpack.c.l.b16 %v34
    %v178 = vunpack.c.l.b16 %v35
    %v179 = vunpack.c.h.b16 %v35
    %v180 = vunpack.c.l.b16 %v36
    %v181 = vunpack.c.l.b16 %v37
    %v182 = vunpack.c.h.b16 %v37
    %v183 = vunpack.c.l.b16 %v38
    %v184 = vunpack.c.l.b16 %v39
    %v185 = vunpack.c.h.b16 %v39
    %v186 = vunpack.c.l.b16 %v40
    %v187 = vunpack.c.l.b16 %v41
    %v188 = vunpack.c.h.b16 %v41
    %v189 = vunpack.c.l.b16 %v42
    %v190 = vunpack.c.l.b16 %v43
    %v191 = vunpack.c.h.b16 %v43
    %v192 = vunpack.c.l.b16 %v44
    %v193 = vunpack.c.l.b16 %v45
    %v194 = vunpack.c.h.b16 %v45
    %v195 = vunpack.c.l.b16 %v46
    %v196 = vunpack.c.l.b16 %v47
    %v197 = vunpack.c.h.b16 %v47
    %v198 = vunpack.c.l.b16 %v48
    %v199 = vunpack.c.l.b16 %v49
    %v200 = vunpack.c.h.b16 %v49
    %v201 = vunpack.c.l.b16 %v50
    %v202 = vunpack.c.l.b16 %v51
    %v203 = vunpack.c.h.b16 %v51
    %v204 = vunpack.c.l.b16 %v52
    %v205 = vunpack.c.l.b16 %v53
    %v206 = vunpack.c.h.b16 %v53
    %v207 = vunpack.c.l.b16 %v54
    %v208 = vunpack.c.l.b16 %v55
    %v209 = vunpack.c.h.b16 %v55
    %v210 = vunpack.c.l.b16 %v56
    %v211 = vunpack.c.l.b16 %v57
    %v212 = vunpack.c.h.b16 %v57
    %v213 = vunpack.c.l.b16 %v58
    %v214 = vunpack.c.l.b16 %v59
    %v215 = vunpack.c.h.b16 %v59
    %v216 = vunpack.c.l.b16 %v60
    %v217 = vunpack.c.l.b16 %v61
    %v218 = vunpack.c.h.b16 %v61
    %v219 = vunpack.c.l.b16 %v62
    %v220 = vunpack.c.l.b16 %v63
    %v221 = vunpack.c.h.b16 %v63
    %v222 = vunpack.c.l.b16 %v64
    %v223 = vunpack.c.l.b16 %v65
    %v224 = vunpack.c.h.b16 %v65
    %v225 = vunpack.c.l.b16 %v66
    %v226 = vunpack.c.l.b16 %v67
    %v227 = vunpack.c.h.b16 %v67
    %v228 = vunpack.c.l.b16 %v68
    %v229 = vunpack.c.l.b16 %v69
    %v230 = vunpack.c.h.b16 %v69
    %v231 = vunpack.c.l.b16 %v70
    %v232 = vunpack.c.l.b16 %v71
    %v233 = vunpack.c.h.b16 %v71
    %v234 = vunpack.c.l.b16 %v72
    %v235 = vunpack.c.l.b16 %v73
    %v236 = vunpack.c.h.b16 %v73
    %v237 = vunpack.c.l.b16 %v74
    %v238 = vunpack.c.l.b16 %v75
    %v239 = vunpack.c.h.b16 %v75
    %v240 = vunpack.c.l.b16 %v76
    %v241 = vunpack.c.l.b16 %v77
    %v242 = vunpack.c.h.b16 %v77
    %v243 = vunpack.c.l.b16 %v78
    %v244 = vunpack.c.l.b16 %v79
    %v245 = vunpack.c.h.b16 %v79
    %v246 = vunpack.c.l.b16 %v80
    %v247 = vunpack.c.l.b16 %v81
    %v248 = vunpack.c.h.b16 %v81
    %v249 = vunpack.c.l.b16 %v82
    %v250 = vpack.c.b16 %v157, %v154
    %v251 = vpack.c.b16 %v158, %v155
    %v252 = vpack.c.b16 %v159, %v156
    %v253 = vpack.c.b16 %v163, %v160
    %v254 = vpack.c.b16 %v164, %v161
    %v255 = vpack.c.b16 %v165, %v162
    %v256 = vpack.c.b16 %v169, %v166
    %v257 = vpack.c.b16 %v170, %v167
    %v258 = vpack.c.b16 %v171, %v168
    %v259 = vpack.c.b16 %v175, %v172
    %v260 = vpack.c.b16 %v176, %v173
    %v261 = vpack.c.b16 %v177, %v174
    %v262 = vpack.c.b16 %v181, %v178
    %v263 = vpack.c.b16 %v182, %v179
    %v264 = vpack.c.b16 %v183, %v180
    %v265 = vpack.c.b16 %v187, %v184
    %v266 = vpack.c.b16 %v188, %v185
    %v267 = vpack.c.b16 %v189, %v186
    %v268 = vpack.c.b16 %v193, %v190
    %v269 = vpack.c.b16 %v194, %v191
    %v270 = vpack.c.b16 %v195, %v192
    %v271 = vpack.c.b16 %v199, %v196
    %v272 = vpack.c.b16 %v200, %v197
    %v273 = vpack.c.b16 %v201, %v198
    %v274 = vpack.c.b16 %v205, %v202
    %v275 = vpack.c.b16 %v206, %v203
    %v276 = vpack.c.b16 %v207, %v204
    %v277 = vpack.c.b16 %v211, %v208
    %v278 = vpack.c.b16 %v212, %v209
    %v279 = vpack.c.b16 %v213, %v210
    %v280 = vpack.c.b16 %v217, %v214
    %v281 = vpack.c.b16 %v218, %v215
    %v282 = vpack.c.b16 %v219, %v216
    %v283 = vpack.c.b16 %v223, %v220
    %v284 = vpack.c.b16 %v224, %v221
    %v285 = vpack.c.b16 %v225, %v222
    %v286 = vpack.c.b16 %v229, %v226
    %v287 = vpack.c.b16 %v230, %v227
    %v288 = vpack.c.b16 %v231, %v228
    %v289 = vpack.c.b16 %v235, %v232
    %v290 = vpack.c.b16 %v236, %v233
    %v291 = vpack.c.b16 %v237, %v234
    %v292 = vpack.c.b16 %v241, %v238
    %v293 = vpack.c.b16 %v242, %v239
    %v294 = vpack.c.b16 %v243, %v240
    %v295 = vpack.c.b16 %v247, %v244
    %v296 = vpack.c.b16 %v248, %v245
    %v297 = vpack.c.b16 %v249, %v246
    %346 = vmatpush.bf16.msra.mxu0 %v271
    %347 = vmatpush.bf16.msra.mxu0 %v268
    %348 = vmatpush.bf16.msra.mxu0 %v265
    %349 = vmatpush.bf16.msra.mxu0 %v262
    %350 = vmatpush.bf16.msra.mxu0 %v259
    %351 = vmatpush.bf16.msra.mxu0 %v256
    %352 = vmatpush.bf16.msra.mxu0 %v253
    %353 = vmatpush.bf16.msra.mxu0 %v250
    %354 = vmatmul.bf16.gmra.mxu0 %v86
    %v355 = vpop.f32.mrf.mxu0
    %v356 = vadd.f32 0.0, %v355
    %v357 = vpop.f32.mrf.mxu0
    %358 = vdwg.mxu0
    %359 = vmatpush.bf16.msra.mxu0 %v295
    %360 = vmatpush.bf16.msra.mxu0 %v292
    %361 = vmatpush.bf16.msra.mxu0 %v289
    %362 = vmatpush.bf16.msra.mxu0 %v286
    %363 = vmatpush.bf16.msra.mxu0 %v283
    %364 = vmatpush.bf16.msra.mxu0 %v280
    %365 = vmatpush.bf16.msra.mxu0 %v277
    %366 = vmatpush.bf16.msra.mxu0 %v274
    %367 = vmatmul.bf16.gmra.mxu0 %v87
    %v368 = vpop.f32.mrf.mxu0
    %v369 = vadd.f32 %v356, %v368
    %v370 = vpop.f32.mrf.mxu0
    %371 = vdwg.mxu0
    %372 = vmatpush.bf16.msra.mxu0 %v272
    %373 = vmatpush.bf16.msra.mxu0 %v269
    %374 = vmatpush.bf16.msra.mxu0 %v266
    %375 = vmatpush.bf16.msra.mxu0 %v263
    %376 = vmatpush.bf16.msra.mxu0 %v260
    %377 = vmatpush.bf16.msra.mxu0 %v257
    %378 = vmatpush.bf16.msra.mxu0 %v254
    %379 = vmatpush.bf16.msra.mxu0 %v251
    %380 = vmatmul.bf16.gmra.mxu0 %v86
    %v381 = vpop.f32.mrf.mxu0
    %v382 = vadd.f32 0.0, %v381
    %v383 = vpop.f32.mrf.mxu0
    %384 = vdwg.mxu0
    %385 = vmatpush.bf16.msra.mxu0 %v296
    %386 = vmatpush.bf16.msra.mxu0 %v293
    %387 = vmatpush.bf16.msra.mxu0 %v290
    %388 = vmatpush.bf16.msra.mxu0 %v287
    %389 = vmatpush.bf16.msra.mxu0 %v284
    %390 = vmatpush.bf16.msra.mxu0 %v281
    %391 = vmatpush.bf16.msra.mxu0 %v278
    %392 = vmatpush.bf16.msra.mxu0 %v275
    %393 = vmatmul.bf16.gmra.mxu0 %v87
    %v394 = vpop.f32.mrf.mxu0
    %v395 = vadd.f32 %v382, %v394
    %v396 = vpop.f32.mrf.mxu0
    %397 = vdwg.mxu0
    %398 = vmatpush.bf16.msra.mxu0 %v273
    %399 = vmatpush.bf16.msra.mxu0 %v270
    %400 = vmatpush.bf16.msra.mxu0 %v267
    %401 = vmatpush.bf16.msra.mxu0 %v264
    %402 = vmatpush.bf16.msra.mxu0 %v261
    %403 = vmatpush.bf16.msra.mxu0 %v258
    %404 = vmatpush.bf16.msra.mxu0 %v255
    %405 = vmatpush.bf16.msra.mxu0 %v252
    %406 = vmatmul.bf16.gmra.mxu0 %v86
    %v407 = vpop.f32.mrf.mxu0
    %v408 = vadd.f32 0.0, %v407
    %v409 = vpop.f32.mrf.mxu0
    %410 = vdwg.mxu0
    %411 = vmatpush.bf16.msra.mxu0 %v297
    %412 = vmatpush.bf16.msra.mxu0 %v294
    %413 = vmatpush.bf16.msra.mxu0 %v291
    %414 = vmatpush.bf16.msra.mxu0 %v288
    %415 = vmatpush.bf16.msra.mxu0 %v285
    %416 = vmatpush.bf16.msra.mxu0 %v282
    %417 = vmatpush.bf16.msra.mxu0 %v279
    %418 = vmatpush.bf16.msra.mxu0 %v276
    %419 = vmatmul.bf16.gmra.mxu0 %v87
    %v420 = vpop.f32.mrf.mxu0
    %v421 = vadd.f32 %v408, %v420
    %v422 = vpop.f32.mrf.mxu0
    %423 = vdwg.mxu0
    %v424 = vld [vmem:[%s3] sm:$0xff]
    %v425 = vperm.slane %v424, 0
    %v426 = vadd.f32 %v369, %v425
    %v427 = vmax.f32 %v426, 0.0
    %v428 = vperm.slane %v424, 1
    %v429 = vadd.f32 %v395, %v428
    %v430 = vmax.f32 %v429, 0.0
    %v431 = vperm.slane %v424, 2
    %v432 = vadd.f32 %v421, %v431
    %v433 = vmax.f32 %v432, 0.0
    %v434 = vadd.f32 %v427, %v430
    %v435 = vadd.f32 %v434, %v433
    %v436 = vmax.f32 %v435, 0.0
    %v437 = vpack.c.bf16 %v436, %v436
    %v438 = vld [vmem:[%s2] sm:$0xf]
    %v439 = vld [vmem:[%s2 + $0x4] sm:$0xf]
    %v440 = vld [vmem:[%s2 + $0x8] sm:$0xf]
    %v441 = vld [vmem:[%s2 + $0xc] sm:$0xf]
    %v442 = vld [vmem:[%s2 + $0x10] sm:$0xf]
    %v443 = vld [vmem:[%s2 + $0x14] sm:$0xf]
    %v444 = vld [vmem:[%s2 + $0x18] sm:$0xf]
    %v445 = vld [vmem:[%s2 + $0x1c] sm:$0xf]
    %v446 = vld [vmem:[%s2 + $0x20] sm:$0xf]
    %v447 = vld [vmem:[%s2 + $0x24] sm:$0xf]
    %v448 = vld [vmem:[%s2 + $0x28] sm:$0xf]
    %v449 = vld [vmem:[%s2 + $0x2c] sm:$0xf]
    %v450 = vld [vmem:[%s2 + $0x30] sm:$0xf]
    %v451 = vld [vmem:[%s2 + $0x34] sm:$0xf]
    %v452 = vld [vmem:[%s2 + $0x38] sm:$0xf]
    %v453 = vld [vmem:[%s2 + $0x3c] sm:$0xf]
    %v454 = vperm.slane %v424, 3
    %v471 = vunpack.c.l.b16 %v438
    %v472 = vunpack.c.l.b16 %v439
    %v473 = vunpack.c.l.b16 %v440
    %v474 = vunpack.c.l.b16 %v441
    %v475 = vunpack.c.l.b16 %v442
    %v476 = vunpack.c.l.b16 %v443
    %v477 = vunpack.c.l.b16 %v444
    %v478 = vunpack.c.l.b16 %v445
    %v479 = vunpack.c.l.b16 %v446
    %v480 = vunpack.c.l.b16 %v447
    %v481 = vunpack.c.l.b16 %v448
    %v482 = vunpack.c.l.b16 %v449
    %v483 = vunpack.c.l.b16 %v450
    %v484 = vunpack.c.l.b16 %v451
    %v485 = vunpack.c.l.b16 %v452
    %v486 = vunpack.c.l.b16 %v453
    %v487 = vpack.c.b16 %v472, %v471
    %v488 = vpack.c.b16 %v474, %v473
    %v489 = vpack.c.b16 %v476, %v475
    %v490 = vpack.c.b16 %v478, %v477
    %v491 = vpack.c.b16 %v480, %v479
    %v492 = vpack.c.b16 %v482, %v481
    %v493 = vpack.c.b16 %v484, %v483
    %v494 = vpack.c.b16 %v486, %v485
    %503 = vmatpush.bf16.msra.mxu0 %v494
    %504 = vmatpush.bf16.msra.mxu0 %v493
    %505 = vmatpush.bf16.msra.mxu0 %v492
    %506 = vmatpush.bf16.msra.mxu0 %v491
    %507 = vmatpush.bf16.msra.mxu0 %v490
    %508 = vmatpush.bf16.msra.mxu0 %v489
    %509 = vmatpush.bf16.msra.mxu0 %v488
    %510 = vmatpush.bf16.msra.mxu0 %v487
    %511 = vmatmul.bf16.gmra.mxu0 %v437
    %v512 = vpop.f32.mrf.mxu0
    %v513 = vadd.f32 %v454, %v512
    %v514 = vpop.f32.mrf.mxu0
    %515 = vdwg.mxu0
    %v516 = vpack.c.bf16 %v513, %v513
    %517 = vst [vmem:[#allocation2] sm:$0xf] %v516
    // Predicated region
    $region18: #{supervised_mahjong_forward.1} parent=1 // pred_check
      _
    $region19: #{supervised_mahjong_forward.1} parent=1 // pred_check_branch
      %519 = sbr.rel (0) target = $region21
    $region20: #{supervised_mahjong_forward.1} parent=1 // pred_region
      %521 = vsyncadd [#allocation3], 0
      %s523 = sshll.u32 [#allocation2], 4
      %s524 = int_to_ptr.vmem [resolvable:$true] %s523
      %s525 = sshll.u32 %s4, 4
      %s526 = int_to_ptr.hbm [resolvable:$true] %s525
      %528 = dma.vmem_to_hbm [thread:$0]  %s524, 64, %s526, [#allocation3]
    $region21: #{supervised_mahjong_forward.1} parent=1 // pred_fallthru
      _
    // Predicated region
    $region22: #{supervised_mahjong_forward.1} parent=1 // pred_check
      _
    $region23: #{supervised_mahjong_forward.1} parent=1 // pred_check_branch
      %530 = sbr.rel (0) target = $region25
    $region24: #{supervised_mahjong_forward.1} parent=1 // pred_region
      %532 = dma.done [#allocation3], 64
    $region25: #{supervised_mahjong_forward.1} parent=1 // pred_fallthru
      _
    %533 = vsyncpa [#allocation3], 1

</llo_original>
